<compile_context>
chip_gen: v7x
topology: tpu7x:2x2x1
jax: 0.10.0
libtpu: 0.0.40
codegen_flags: <defaults>
</compile_context>

<pallas_src>
import functools

import jax
import jax.numpy as jnp
from jax.experimental import pallas as pl
from jax.experimental.pallas import tpu as pltpu

block_size = 8
n_embd = 64
vocab = 65            # synthetic vocab size (len(set(read)) in the original)
VOCAB_PAD = 128       # lane-dense padded vocab (multiple of 128)
INFER_ROW_TILE = 512  # rows per grid step (inference): amortize step overhead
TRAIN_ROW_TILE = 128  # rows per grid step (training): fit the 64-vreg file


def _round_up(x, m):
    return ((x + m - 1) // m) * m


def _infer_kernel(idx_ref, fused_ref, out_ref):
    # idx_ref:   [TILE, 1]               int32
    # fused_ref: [VOCAB_PAD, VOCAB_PAD]  f32 (tok @ W^T + b, pad lanes -1e30)
    # out_ref:   [TILE, VOCAB_PAD]       f32
    tile = idx_ref.shape[0]
    lane = jax.lax.broadcasted_iota(jnp.int32, (tile, VOCAB_PAD), 1)
    onehot = (lane == idx_ref[...]).astype(jnp.float32)
    out_ref[...] = jnp.dot(onehot, fused_ref[...],
                           preferred_element_type=jnp.float32)


def _train_kernel(idx_ref, tgt_ref, fused_ref, lse_ref, out_ref, nll_ref,
                  *, bt_true):
    # idx_ref/tgt_ref: [TILE, 1] int32
    # fused_ref:       [VOCAB_PAD, VOCAB_PAD] f32 (resident)
    # lse_ref:         [1, VOCAB_PAD] f32 (per-token LSE, resident)
    # out_ref:         [TILE, VOCAB_PAD] f32
    # nll_ref:         [TILE, 1] f32 (per-example NLL; padded rows write 0)
    tile = idx_ref.shape[0]
    step = pl.program_id(0)

    lane = jax.lax.broadcasted_iota(jnp.int32, (tile, VOCAB_PAD), 1)
    onehot = (lane == idx_ref[...]).astype(jnp.float32)
    logits = jnp.dot(onehot, fused_ref[...],
                     preferred_element_type=jnp.float32)   # [TILE, VOCAB_PAD]
    out_ref[...] = logits

    # LSE is precomputed per token (logits row i == fused[idx_i]); gather it
    # with the same one-hot -> no exp/log (EUP) work in the hot loop.
    lse = jnp.sum(onehot * lse_ref[...], axis=-1, keepdims=True)     # [TILE,1]
    tgt_onehot = (lane == tgt_ref[...]).astype(jnp.float32)
    tgt_logit = jnp.sum(tgt_onehot * logits, axis=-1, keepdims=True)  # [TILE,1]
    per_example = lse - tgt_logit

    # Rows past the true BT (tail padding) contribute 0 to the loss sum.
    row = jax.lax.broadcasted_iota(jnp.int32, (tile, 1), 0) + step * tile
    nll_ref[...] = jnp.where(row < bt_true, per_example, 0.0)


def init_params(key):
    k1, k2, k3, k4 = jax.random.split(key, 4)
    tok = jax.random.normal(k1, (vocab, n_embd), jnp.float32)
    pos = jax.random.normal(k2, (block_size, n_embd), jnp.float32)
    # nn.Linear(n_embd, vocab): weight [vocab, n_embd], bias [vocab]
    bound = 1.0 / jnp.sqrt(jnp.float32(n_embd))
    w = jax.random.uniform(k3, (vocab, n_embd), jnp.float32, -bound, bound)
    b = jax.random.uniform(k4, (vocab,), jnp.float32, -bound, bound)
    return {"tok": tok, "pos": pos, "w": w, "b": b}


def prepare_tables(params):
    # One-time setup OUTSIDE the hot path.  Logits for token v are row v of
    # fused = tok @ W^T + b (lm_head applied to tok_emb, per the reference).
    fused = params["tok"] @ params["w"].T + params["b"][None, :]   # [vocab, vocab]
    # Pad lanes baked to a large FINITE negative (NOT -inf: the one-hot matmul
    # would otherwise compute 0 * inf = NaN in the MXU accumulation).
    fused_pad = jnp.full((VOCAB_PAD, VOCAB_PAD), -1e30, jnp.float32)
    fused_pad = fused_pad.at[:vocab, :vocab].set(fused)
    # Per-token logsumexp over the TRUE vocab only.
    lse_tok = jax.nn.logsumexp(fused, axis=-1)                      # [vocab]
    lse_pad = jnp.zeros((1, VOCAB_PAD), jnp.float32).at[0, :vocab].set(lse_tok)
    return {"fused": fused_pad, "lse": lse_pad}


def bigram_forward(idx, tables, targets=None):
    """Returns (scores_padded [B, T, VOCAB_PAD], loss).

    The logits keep the lane-padded 128-wide layout so the kernel's writeback
    is the only HBM pass over them; slice [..., :vocab] lazily where needed.
    """
    B, T = idx.shape
    bt = B * T

    row_tile = INFER_ROW_TILE if targets is None else TRAIN_ROW_TILE
    tile = min(row_tile, _round_up(bt, 8))
    bt_pad = _round_up(bt, tile)
    grid = (bt_pad // tile,)

    def flat_pad(x):
        f = x.reshape(bt, 1).astype(jnp.int32)
        if bt_pad == bt:                       # no padding copy when aligned
            return f
        return jnp.zeros((bt_pad, 1), jnp.int32).at[:bt, :].set(f)

    idx_flat = flat_pad(idx)

    row_id_spec = pl.BlockSpec((tile, 1), lambda i: (i, 0))
    tbl_spec = pl.BlockSpec((VOCAB_PAD, VOCAB_PAD), lambda i: (0, 0))  # resident
    out_spec = pl.BlockSpec((tile, VOCAB_PAD), lambda i: (i, 0))

    if targets is None:
        logits_pad = pl.pallas_call(
            _infer_kernel,
            out_shape=jax.ShapeDtypeStruct((bt_pad, VOCAB_PAD), jnp.float32),
            grid=grid,
            in_specs=[row_id_spec, tbl_spec],
            out_specs=out_spec,
            compiler_params=pltpu.CompilerParams(
                dimension_semantics=("parallel",)),
        )(idx_flat, tables["fused"])
        loss = None
    else:
        tgt_flat = flat_pad(targets)
        lse_spec = pl.BlockSpec((1, VOCAB_PAD), lambda i: (0, 0))      # resident
        nll_spec = pl.BlockSpec((tile, 1), lambda i: (i, 0))
        logits_pad, nll = pl.pallas_call(
            functools.partial(_train_kernel, bt_true=bt),
            out_shape=(jax.ShapeDtypeStruct((bt_pad, VOCAB_PAD), jnp.float32),
                       jax.ShapeDtypeStruct((bt_pad, 1), jnp.float32)),
            grid=grid,
            in_specs=[row_id_spec, row_id_spec, tbl_spec, lse_spec],
            out_specs=(out_spec, nll_spec),
            compiler_params=pltpu.CompilerParams(
                dimension_semantics=("parallel",)),  # per-tile partials -> megacore OK
        )(idx_flat, tgt_flat, tables["fused"], tables["lse"])
        loss = jnp.sum(nll) * (1.0 / bt)

    if bt_pad != bt:
        logits_pad = logits_pad[:bt]
    scores_padded = logits_pad.reshape(B, T, VOCAB_PAD)
    return scores_padded, loss


def _reference(idx, params, targets):
    tok_emb = params["tok"][idx]                       # [B, T, n_embd]
    scores = tok_emb @ params["w"].T + params["b"]     # [B, T, vocab]
    flat = scores.reshape(-1, scores.shape[-1])
    lse = jax.nn.logsumexp(flat, axis=-1)
    tgt_logit = jnp.take_along_axis(flat, targets.reshape(-1, 1), axis=-1)[:, 0]
    loss = jnp.mean(lse - tgt_logit)
    return scores, loss


if __name__ == "__main__":
    key = jax.random.PRNGKey(0)
    pkey, ikey, tkey = jax.random.split(key, 3)
    params = init_params(pkey)
    tables = prepare_tables(params)

    B, T = 2, block_size
    idx = jax.random.randint(ikey, (B, T), 0, vocab, dtype=jnp.int32)
    targets = jax.random.randint(tkey, (B, T), 0, vocab, dtype=jnp.int32)

    # Training path (logits + per-example NLL, fused in one kernel).
    scores_pad, loss = bigram_forward(idx, tables, targets)
    scores_pad = jax.block_until_ready(scores_pad)
    loss = jax.block_until_ready(loss)

    # Inference path (logits only).
    scores_pad_inf, loss_inf = bigram_forward(idx, tables, None)
    scores_pad_inf = jax.block_until_ready(scores_pad_inf)

    ref_scores, ref_loss = _reference(idx, params, targets)

    scores = scores_pad[..., :vocab]          # lazy slice at the point of use
    scores_inf = scores_pad_inf[..., :vocab]
    assert scores.shape == (B, T, vocab)
    assert loss_inf is None
    assert jnp.allclose(scores, ref_scores, atol=1e-4, rtol=1e-4)
    assert jnp.allclose(scores_inf, ref_scores, atol=1e-4, rtol=1e-4)
    assert jnp.allclose(loss, ref_loss, atol=1e-4, rtol=1e-4)

    print("KERNEL_OK")
</pallas_src>

<mosaic_0001>
module attributes {stable_mosaic.version = 11 : i64} {
  func.func @_train_kernel(%arg0: i32, %arg1: memref<16x1xi32, #tpu.memory_space<vmem>>, %arg2: memref<16x1xi32, #tpu.memory_space<vmem>>, %arg3: memref<128x128xf32, #tpu.memory_space<vmem>>, %arg4: memref<1x128xf32, #tpu.memory_space<vmem>>, %arg5: memref<16x128xf32, #tpu.memory_space<vmem>>, %arg6: memref<16x1xf32, #tpu.memory_space<vmem>>) attributes {dimension_semantics = [#tpu.dimension_semantics<parallel>], iteration_bounds = array<i64: 1>, scalar_prefetch = 0 : i64, scratch_operands = 0 : i64, tpu.core_type = #tpu.core_type<tc>, window_params = [{transform_indices = @transform_0, window_bounds = array<i64: 16, 1>}, {transform_indices = @transform_1, window_bounds = array<i64: 16, 1>}, {pipeline_mode = #tpu.pipeline_mode<synchronous>, transform_indices = @transform_2, window_bounds = array<i64: 128, 128>}, {pipeline_mode = #tpu.pipeline_mode<synchronous>, transform_indices = @transform_3, window_bounds = array<i64: 1, 128>}, {transform_indices = @transform_4, window_bounds = array<i64: 16, 128>}, {transform_indices = @transform_5, window_bounds = array<i64: 16, 1>}]} {
    %0 = tpu.iota {dimensions = array<i32: 1>} : vector<16x128xi32>
    %c0 = arith.constant 0 : index
    %c0_0 = arith.constant 0 : index
    %1 = vector.load %arg1[%c0, %c0_0] : memref<16x1xi32, #tpu.memory_space<vmem>>, vector<16x1xi32>
    %2 = vector.broadcast %1 : vector<16x1xi32> to vector<16x128xi32>
    %3 = arith.cmpi eq, %0, %2 : vector<16x128xi32>
    %4 = arith.extui %3 : vector<16x128xi1> to vector<16x128xi32>
    %5 = arith.sitofp %4 : vector<16x128xi32> to vector<16x128xf32>
    %c0_1 = arith.constant 0 : index
    %c0_2 = arith.constant 0 : index
    %6 = vector.load %arg3[%c0_1, %c0_2] : memref<128x128xf32, #tpu.memory_space<vmem>>, vector<128x128xf32>
    %cst = arith.constant dense<0.000000e+00> : vector<16x128xf32>
    %7 = tpu.matmul %5, %6, %cst {dimension_numbers = #tpu.dot_dimension_numbers<[1], [0], [0], [1], [0, 0, 1, 1], [], []>} : vector<16x128xf32>, vector<128x128xf32>, vector<16x128xf32> -> vector<16x128xf32>
    %c0_3 = arith.constant 0 : index
    %c0_4 = arith.constant 0 : index
    %8 = vector.load %arg5[%c0_3, %c0_4] : memref<16x128xf32, #tpu.memory_space<vmem>>, vector<16x128xf32>
    tpu.vector_store %arg5[%c0_3, %c0_4], %7 {strides = array<i32>} : memref<16x128xf32, #tpu.memory_space<vmem>>, vector<16x128xf32>,
    %c0_5 = arith.constant 0 : index
    %c0_6 = arith.constant 0 : index
    %9 = vector.load %arg4[%c0_5, %c0_6] : memref<1x128xf32, #tpu.memory_space<vmem>>, vector<1x128xf32>
    %10 = vector.broadcast %9 : vector<1x128xf32> to vector<16x128xf32>
    %11 = arith.mulf %5, %10 : vector<16x128xf32>
    %cst_7 = arith.constant dense<0.000000e+00> : vector<16xf32>
    %12 = vector.multi_reduction <add>, %11, %cst_7 [1] : vector<16x128xf32> to vector<16xf32>
    %13 = vector.shape_cast %12 : vector<16xf32> to vector<16x1xf32>
    %c0_8 = arith.constant 0 : index
    %c0_9 = arith.constant 0 : index
    %14 = vector.load %arg2[%c0_8, %c0_9] : memref<16x1xi32, #tpu.memory_space<vmem>>, vector<16x1xi32>
    %15 = vector.broadcast %14 : vector<16x1xi32> to vector<16x128xi32>
    %16 = arith.cmpi eq, %0, %15 : vector<16x128xi32>
    %17 = arith.extui %16 : vector<16x128xi1> to vector<16x128xi32>
    %18 = arith.sitofp %17 : vector<16x128xi32> to vector<16x128xf32>
    %19 = arith.mulf %18, %7 : vector<16x128xf32>
    %cst_10 = arith.constant dense<0.000000e+00> : vector<16xf32>
    %20 = vector.multi_reduction <add>, %19, %cst_10 [1] : vector<16x128xf32> to vector<16xf32>
    %21 = vector.shape_cast %20 : vector<16xf32> to vector<16x1xf32>
    %22 = arith.subf %13, %21 : vector<16x1xf32>
    %23 = tpu.iota {dimensions = array<i32: 0>} : vector<16x1xi32>
    %c16_i32 = arith.constant 16 : i32
    %24 = arith.muli %arg0, %c16_i32 : i32
    %25 = vector.broadcast %24 : i32 to vector<16x1xi32>
    %26 = arith.addi %23, %25 : vector<16x1xi32>
    %c16_i32_11 = arith.constant 16 : i32
    %27 = vector.broadcast %c16_i32_11 : i32 to vector<16x1xi32>
    %28 = arith.cmpi slt, %26, %27 : vector<16x1xi32>
    %cst_12 = arith.constant 0.000000e+00 : f32
    %29 = vector.broadcast %cst_12 : f32 to vector<16x1xf32>
    %30 = arith.select %28, %22, %29 : vector<16x1xi1>, vector<16x1xf32>
    %c0_13 = arith.constant 0 : index
    %c0_14 = arith.constant 0 : index
    %31 = vector.load %arg6[%c0_13, %c0_14] : memref<16x1xf32, #tpu.memory_space<vmem>>, vector<16x1xf32>
    tpu.vector_store %arg6[%c0_13, %c0_14], %30 {strides = array<i32>} : memref<16x1xf32, #tpu.memory_space<vmem>>, vector<16x1xf32>,
    return
  }
  func.func @transform_0(%arg0: i32) -> (i32, i32) {
    %c0_i32 = arith.constant 0 : i32
    %c0_i32_0 = arith.constant 0 : i32
    return %arg0, %c0_i32 : i32, i32
  }
  func.func @transform_1(%arg0: i32) -> (i32, i32) {
    %c0_i32 = arith.constant 0 : i32
    %c0_i32_0 = arith.constant 0 : i32
    return %arg0, %c0_i32 : i32, i32
  }
  func.func @transform_2(%arg0: i32) -> (i32, i32) {
    %c0_i32 = arith.constant 0 : i32
    %c0_i32_0 = arith.constant 0 : i32
    %c0_i32_1 = arith.constant 0 : i32
    return %c0_i32, %c0_i32_0 : i32, i32
  }
  func.func @transform_3(%arg0: i32) -> (i32, i32) {
    %c0_i32 = arith.constant 0 : i32
    %c0_i32_0 = arith.constant 0 : i32
    %c0_i32_1 = arith.constant 0 : i32
    return %c0_i32, %c0_i32_0 : i32, i32
  }
  func.func @transform_4(%arg0: i32) -> (i32, i32) {
    %c0_i32 = arith.constant 0 : i32
    %c0_i32_0 = arith.constant 0 : i32
    return %arg0, %c0_i32 : i32, i32
  }
  func.func @transform_5(%arg0: i32) -> (i32, i32) {
    %c0_i32 = arith.constant 0 : i32
    %c0_i32_0 = arith.constant 0 : i32
    return %arg0, %c0_i32 : i32, i32
  }
}

</mosaic_0001>

<llo_original>
// kernel: tpu_custom_call.1
$region0: #{tpu_custom_call.1}
  #allocation0 [shape = 'u32[]', space=smem, size = 0x4, offset = 0x4, fixed_abs, tag = 'smem constant byte address 0x4 - core index']
  #allocation1 [shape = 'u32[144,128]{1,0:T(1,128)}', space=vmem, size = 0x12000, scoped, tag = 'internal scratch']
  %s0 = inlined_call_operand.vmem [shape: s32[16,1], index: 0, kind: input, shape index: {}]
  %s1 = inlined_call_operand.vmem [shape: s32[16,1], index: 1, kind: input, shape index: {}]
  %s2 = inlined_call_operand.hbm [shape: f32[128,128], index: 2, kind: input, shape index: {}]
  %s3 = inlined_call_operand.vmem [shape: f32[1,128], index: 3, kind: input, shape index: {}]
  %s4 = inlined_call_operand.hbm [shape: f32[16,128], index: 4, kind: output, shape index: {0}]
  %s5 = inlined_call_operand.vmem [shape: f32[16,1], index: 5, kind: output, shape index: {1}]
  %6 = xla_tuple %s4, %s5
  %s7 = sld [smem:[#allocation0]]
  $region38: #{tpu_custom_call.1} parent=0
    _
  %s9 = ssub.s32 1, %s7
  %s10 = scalar_select 0, %s9, %s7
  $region1: #{tpu_custom_call.1} parent=0
    #allocation2 [shape = 'u8[65536]{0}', space=vmem, size = 0x10000, scoped, tag = 'input window, operand 2, single buffered']
    #allocation3 [shape = 's32[1]{0}', space=sflag, size = 0x4, scoped, tag = 'scoped memory for tpu_custom_call.1']
    #allocation4 [shape = 's32[1]{0}', space=sflag, size = 0x4, scoped, tag = 'scoped memory for tpu_custom_call.1']
    #allocation5 [shape = 'u8[8192]{0}', space=vmem, size = 0x2000, scoped, tag = 'output window, operand 0, single buffered']
    %11 = vsyncpa [#allocation3], 0
    %12 = vsyncpa [#allocation4], 0
    // Predicated region
    $region2: #{tpu_custom_call.1} parent=1 // pred_check
      _
    $region3: #{tpu_custom_call.1} parent=1 // pred_check_branch
      %14 = sbr.rel (0) target = $region5
    $region4: #{tpu_custom_call.1} parent=1 // pred_region
      _
    $region5: #{tpu_custom_call.1} parent=1 // pred_fallthru
      _
    // Predicated region
    $region6: #{tpu_custom_call.1} parent=1 // pred_check
      _
    $region7: #{tpu_custom_call.1} parent=1 // pred_check_branch
      %16 = sbr.rel (0) target = $region9
    $region8: #{tpu_custom_call.1} parent=1 // pred_region
      _
    $region9: #{tpu_custom_call.1} parent=1 // pred_fallthru
      _
    // Predicated region
    $region10: #{tpu_custom_call.1} parent=1 // pred_check
      _
    $region11: #{tpu_custom_call.1} parent=1 // pred_check_branch
      %18 = sbr.rel (0) target = $region13
    $region12: #{tpu_custom_call.1} parent=1 // pred_region
      %s20 = ssub.s32 2048, 2048
      %21 = vsyncadd [#allocation3], %s20
      %s22 = sshll.u32 [#allocation2], 4
      %s23 = int_to_ptr.vmem [resolvable:$true] %s22
      %28 = dma.hbm_to_vmem [thread:$0]  %s2, 2048, %s23, [#allocation3], 128, 128, 8
    $region13: #{tpu_custom_call.1} parent=1 // pred_fallthru
      _
    // Predicated region
    $region14: #{tpu_custom_call.1} parent=1 // pred_check
      _
    $region15: #{tpu_custom_call.1} parent=1 // pred_check_branch
      %30 = sbr.rel (0) target = $region17
    $region16: #{tpu_custom_call.1} parent=1 // pred_region
      _
    $region17: #{tpu_custom_call.1} parent=1 // pred_fallthru
      _
    // Predicated region
    $region18: #{tpu_custom_call.1} parent=1 // pred_check
      _
    $region19: #{tpu_custom_call.1} parent=1 // pred_check_branch
      %32 = sbr.rel (0) target = $region21
    $region20: #{tpu_custom_call.1} parent=1 // pred_region
      %33 = dma.done [#allocation3], 2048
    $region21: #{tpu_custom_call.1} parent=1 // pred_fallthru
      _
    %v34 = vlaneseq
    %v35 = vand.u32 %v34, 127
    %v36 = vld [vmem:[%s0] sm:$0xff]
    %v37 = vld [vmem:[%s0 + $0x8] sm:$0xff]
    %38 = vset.pattern.permute.xlu0 0
    %39 = vperm.xlu0 %38, %v36
    %v40 = vpop.permute.xlu0 %39
    %41 = vset.pattern.permute.xlu0 0
    %42 = vperm.xlu0 %41, %v37
    %v43 = vpop.permute.xlu0 %42
    %vm44 = vcmp.eq.s32.totalorder %v35, %v40
    %vm45 = vcmp.eq.s32.totalorder %v35, %v43
    %v46 = vsel %vm44, 1, 0
    %v47 = vsel %vm45, 1, 0
    %v48 = vcvt.s32.f32 %v46
    %v49 = vcvt.s32.f32 %v47
    %v50 = vld [vmem:[#allocation2] sm:$0xff]
    %v51 = vld [vmem:[#allocation2 + $0x8] sm:$0xff]
    %v52 = vld [vmem:[#allocation2 + $0x10] sm:$0xff]
    %v53 = vld [vmem:[#allocation2 + $0x18] sm:$0xff]
    %v54 = vld [vmem:[#allocation2 + $0x20] sm:$0xff]
    %v55 = vld [vmem:[#allocation2 + $0x28] sm:$0xff]
    %v56 = vld [vmem:[#allocation2 + $0x30] sm:$0xff]
    %v57 = vld [vmem:[#allocation2 + $0x38] sm:$0xff]
    %v58 = vld [vmem:[#allocation2 + $0x40] sm:$0xff]
    %v59 = vld [vmem:[#allocation2 + $0x48] sm:$0xff]
    %v60 = vld [vmem:[#allocation2 + $0x50] sm:$0xff]
    %v61 = vld [vmem:[#allocation2 + $0x58] sm:$0xff]
    %v62 = vld [vmem:[#allocation2 + $0x60] sm:$0xff]
    %v63 = vld [vmem:[#allocation2 + $0x68] sm:$0xff]
    %v64 = vld [vmem:[#allocation2 + $0x70] sm:$0xff]
    %v65 = vld [vmem:[#allocation2 + $0x78] sm:$0xff]
    %66 = vmatprep.subr.mxu0 0.0
    %67 = vmatpush1.msra.mxu0 %v50
    %68 = vmatprep.subr.mxu0 0.0
    %69 = vmatpush1.msra.mxu0 %v51
    %70 = vmatprep.subr.mxu0 0.0
    %71 = vmatpush1.msra.mxu0 %v52
    %72 = vmatprep.subr.mxu0 0.0
    %73 = vmatpush1.msra.mxu0 %v53
    %74 = vmatprep.subr.mxu0 0.0
    %75 = vmatpush1.msra.mxu0 %v54
    %76 = vmatprep.subr.mxu0 0.0
    %77 = vmatpush1.msra.mxu0 %v55
    %78 = vmatprep.subr.mxu0 0.0
    %79 = vmatpush1.msra.mxu0 %v56
    %80 = vmatprep.subr.mxu0 0.0
    %81 = vmatpush1.msra.mxu0 %v57
    %82 = vmatprep.subr.mxu0 0.0
    %83 = vmatpush1.msra.mxu0 %v58
    %84 = vmatprep.subr.mxu0 0.0
    %85 = vmatpush1.msra.mxu0 %v59
    %86 = vmatprep.subr.mxu0 0.0
    %87 = vmatpush1.msra.mxu0 %v60
    %88 = vmatprep.subr.mxu0 0.0
    %89 = vmatpush1.msra.mxu0 %v61
    %90 = vmatprep.subr.mxu0 0.0
    %91 = vmatpush1.msra.mxu0 %v62
    %92 = vmatprep.subr.mxu0 0.0
    %93 = vmatpush1.msra.mxu0 %v63
    %94 = vmatprep.subr.mxu0 0.0
    %95 = vmatpush1.msra.mxu0 %v64
    %96 = vmatprep.subr.mxu0 0.0
    %97 = vmatpush1.msra.mxu0 %v65
    %98 = vmatprep.subr.mxu0 0.0
    %99 = vmatpush1.msra.mxu0 0.0
    %100 = vmatprep.subr.mxu0 0.0
    %101 = vmatpush1.msra.mxu0 0.0
    %102 = vmatprep.subr.mxu0 0.0
    %103 = vmatpush1.msra.mxu0 0.0
    %104 = vmatprep.subr.mxu0 0.0
    %105 = vmatpush1.msra.mxu0 0.0
    %106 = vmatprep.subr.mxu0 0.0
    %107 = vmatpush1.msra.mxu0 0.0
    %108 = vmatprep.subr.mxu0 0.0
    %109 = vmatpush1.msra.mxu0 0.0
    %110 = vmatprep.subr.mxu0 0.0
    %111 = vmatpush1.msra.mxu0 0.0
    %112 = vmatprep.subr.mxu0 0.0
    %113 = vmatpush1.msra.mxu0 0.0
    %114 = vmatprep.subr.mxu0 0.0
    %115 = vmatpush1.msra.mxu0 0.0
    %116 = vmatprep.subr.mxu0 0.0
    %117 = vmatpush1.msra.mxu0 0.0
    %118 = vmatprep.subr.mxu0 0.0
    %119 = vmatpush1.msra.mxu0 0.0
    %120 = vmatprep.subr.mxu0 0.0
    %121 = vmatpush1.msra.mxu0 0.0
    %122 = vmatprep.subr.mxu0 0.0
    %123 = vmatpush1.msra.mxu0 0.0
    %124 = vmatprep.subr.mxu0 0.0
    %125 = vmatpush1.msra.mxu0 0.0
    %126 = vmatprep.subr.mxu0 0.0
    %127 = vmatpush1.msra.mxu0 0.0
    %128 = vmatprep.subr.mxu0 0.0
    %129 = vmatpush1.msra.mxu0 0.0
    %130 = vmatprep.mubr.f32.mxu0 0.0
    %131 = vmatmul.mubr.f32.gmra.mrb[0].mxu0 %v48
    %v132 = vpop.f32.mrb[0].mxu0
    %v133 = vadd.f32 0.0, %v132
    %v134 = vpop.f32.mrb[0].mxu0
    %135 = vmatprep.mubr.f32.mxu0 0.0
    %136 = vmatmul.mubr.f32.gmra.mrb[0].mxu0 %v49
    %v137 = vpop.f32.mrb[0].mxu0
    %v138 = vadd.f32 0.0, %v137
    %v139 = vpop.f32.mrb[0].mxu0
    %140 = vdwg.mxu0
    %141 = vst [vmem:[#allocation5] sm:$0xff] %v133
    %142 = vst [vmem:[#allocation5 + $0x8] sm:$0xff] %v138
    %v143 = vld [vmem:[%s3] sm:$0x1]
    %v145 = vlaneseq
    %v146 = vshrl.u32 %v145, 7
    %v147 = vsub.s32 0, %v146
    %v148 = vrot.slane %v143, %v147
    %v150 = vmul.f32 %v48, %v148
    %v151 = vmul.f32 %v49, %v148
    %152 = vadd.xlane.f32.xlu0 %v150
    %v153 = vpop.xlane.xlu0 %152
    %154 = vadd.xlane.f32.xlu0 %v151
    %v155 = vpop.xlane.xlu0 %154
    %v156 = vld [vmem:[%s1] sm:$0xff]
    %v157 = vld [vmem:[%s1 + $0x8] sm:$0xff]
    %158 = vset.pattern.permute.xlu0 0
    %159 = vperm.xlu0 %158, %v156
    %v160 = vpop.permute.xlu0 %159
    %161 = vset.pattern.permute.xlu0 0
    %162 = vperm.xlu0 %161, %v157
    %v163 = vpop.permute.xlu0 %162
    %vm164 = vcmp.eq.s32.totalorder %v35, %v160
    %vm165 = vcmp.eq.s32.totalorder %v35, %v163
    %v166 = vsel %vm164, 1, 0
    %v167 = vsel %vm165, 1, 0
    %v168 = vcvt.s32.f32 %v166
    %v169 = vcvt.s32.f32 %v167
    %v170 = vmul.f32 %v168, %v133
    %v171 = vmul.f32 %v169, %v138
    %172 = vadd.xlane.f32.xlu0 %v170
    %v173 = vpop.xlane.xlu0 %172
    %174 = vadd.xlane.f32.xlu0 %v171
    %v175 = vpop.xlane.xlu0 %174
    %v176 = vsub.f32 %v153, %v173
    %v177 = vsub.f32 %v155, %v175
    %v178 = vlaneseq
    %v179 = vshrl.u32 %v178, 7
    %v180 = vadd.s32 %v179, 8
    %s181 = smul.u32 0, 16
    %v182 = vstv %s181
    %v183 = vadd.s32 %v179, %v182
    %v184 = vadd.s32 %v180, %v182
    %vm185 = vcmp.lt.s32.totalorder %v183, 16
    %vm186 = vcmp.lt.s32.totalorder %v184, 16
    %v187 = vsel %vm185, %v176, 0.0
    %v188 = vsel %vm186, %v177, 0.0
    %vm189 = vcmask 7168
    %190 = vst.msk [vmem:[%s5] sm:$0xff] %vm189, %v187
    %191 = vst.msk [vmem:[%s5 + $0x8] sm:$0xff] %vm189, %v188
    // Predicated region
    $region22: #{tpu_custom_call.1} parent=1 // pred_check
      _
    $region23: #{tpu_custom_call.1} parent=1 // pred_check_branch
      %193 = sbr.rel (0) target = $region25
    $region24: #{tpu_custom_call.1} parent=1 // pred_region
      %s195 = ssub.s32 256, 256
      %196 = vsyncadd [#allocation4], %s195
      %s197 = sshll.u32 [#allocation5], 4
      %s198 = int_to_ptr.vmem [resolvable:$true] %s197
      %203 = dma.vmem_to_hbm [thread:$0]  %s198, 256, %s4, [#allocation4], 128, 128, 8
    $region25: #{tpu_custom_call.1} parent=1 // pred_fallthru
      _
    // Predicated region
    $region26: #{tpu_custom_call.1} parent=1 // pred_check
      _
    $region27: #{tpu_custom_call.1} parent=1 // pred_check_branch
      %205 = sbr.rel (0) target = $region29
    $region28: #{tpu_custom_call.1} parent=1 // pred_region
      _
    $region29: #{tpu_custom_call.1} parent=1 // pred_fallthru
      _
    // Predicated region
    $region30: #{tpu_custom_call.1} parent=1 // pred_check
      _
    $region31: #{tpu_custom_call.1} parent=1 // pred_check_branch
      %207 = sbr.rel (0) target = $region33
    $region32: #{tpu_custom_call.1} parent=1 // pred_region
      %208 = dma.done [#allocation4], 256
    $region33: #{tpu_custom_call.1} parent=1 // pred_fallthru
      _
    // Predicated region
    $region34: #{tpu_custom_call.1} parent=1 // pred_check
      _
    $region35: #{tpu_custom_call.1} parent=1 // pred_check_branch
      %210 = sbr.rel (0) target = $region37
    $region36: #{tpu_custom_call.1} parent=1 // pred_region
      _
    $region37: #{tpu_custom_call.1} parent=1 // pred_fallthru
      _
    %211 = vsyncpa [#allocation3], 1
    %212 = vsyncpa [#allocation4], 1

</llo_original>
